<compile_context>
chip_gen: v7x
topology: tpu7x:2x2x1
jax: 0.10.0
libtpu: 0.0.40
codegen_flags: <defaults>
</compile_context>

<pallas_src>
import functools

import jax
import jax.numpy as jnp
from jax import lax
from jax.experimental import pallas as pl
from jax.experimental.pallas import tpu as pltpu


def _speech_clf_head_kernel(h_ref, wp_ref, bp_ref, wc_ref, bc_ref, o_ref,
                            acc_ref, *, seq_len, seq_tile, needs_mask):
    """Streamed mean-pool over sequence + projector + tanh + classifier.

    h_ref  : (tb, ts, H) streamed tile of last_hidden_state (input dtype, bf16 ok)
    wp_ref : (H, H)      projector weight (in, out)
    bp_ref : (1, H)      projector bias
    wc_ref : (H, L)      classifier weight (in, out)
    bc_ref : (1, L)      classifier bias
    o_ref  : (tb, L)     logits (resident across the sequence axis)
    acc_ref: (tb, H) f32 running sum over the sequence
    """
    s = pl.program_id(1)

    @pl.when(s == 0)
    def _():
        acc_ref[...] = jnp.zeros_like(acc_ref)

    h = h_ref[...]                         # keep input dtype; no (B,S,H) f32 upcast
    if needs_mask:
        # Mask padded tail rows so they do not bias the mean.
        row = lax.broadcasted_iota(jnp.int32, (1, seq_tile, 1), 1) + s * seq_tile
        h = jnp.where(row < seq_len, h, jnp.zeros_like(h))
    acc_ref[...] += jnp.sum(h.astype(jnp.float32), axis=1)   # f32 partial sums

    @pl.when(s == pl.num_programs(1) - 1)
    def _():
        x = acc_ref[...] * jnp.float32(1.0 / seq_len)         # true mean (1/S folded here)
        x = jnp.dot(x, wp_ref[...].astype(jnp.float32),
                    preferred_element_type=jnp.float32) + bp_ref[...].astype(jnp.float32)
        x = jnp.tanh(x)
        logits = jnp.dot(x, wc_ref[...].astype(jnp.float32),
                         preferred_element_type=jnp.float32) + bc_ref[...].astype(jnp.float32)
        o_ref[...] = logits.astype(o_ref.dtype)


def speech_clf_head(hidden_states, w_proj, b_proj, w_clf, b_clf,
                    *, batch_tile=None, seq_tile=None, out_dtype=jnp.float32):
    B, S, H = hidden_states.shape
    L = w_clf.shape[1]

    # Batch tile: second-to-last dim of the (tb, L) output block must be a
    # multiple of 8 or equal to B.
    if batch_tile is None:
        batch_tile = B if B <= 8 else 8
    assert B % batch_tile == 0, "batch_tile must divide B"

    # Sequence tile: second-to-last dim of the streamed (tb, ts, H) block must
    # be a multiple of 8 or equal to S.  512 keeps 2x double-buffered bf16
    # tiles well inside the smallest scoped-VMEM budgets (v5e 16 MiB default,
    # v7x 32 MiB default / 64 MiB physical) at H=1024-class hidden sizes.
    if seq_tile is None:
        seq_tile = S if S <= 512 else 512
    if seq_tile != S:
        assert seq_tile % 8 == 0, "seq_tile must be a multiple of 8"
    needs_mask = (S % seq_tile) != 0
    n_seq = pl.cdiv(S, seq_tile)

    kernel = functools.partial(_speech_clf_head_kernel,
                               seq_len=S, seq_tile=seq_tile, needs_mask=needs_mask)

    h_item = jnp.dtype(hidden_states.dtype).itemsize
    w_item = jnp.dtype(w_proj.dtype).itemsize
    cost = pl.CostEstimate(
        flops=2 * B * H * H + 2 * B * H * L + B * S * H,
        transcendentals=B * H,
        bytes_accessed=(B * S * H * h_item
                        + (H * H + H + H * L + L) * w_item
                        + B * L * jnp.dtype(out_dtype).itemsize),
    )

    grid_spec = pltpu.PrefetchScalarGridSpec(
        num_scalar_prefetch=0,
        grid=(B // batch_tile, n_seq),
        in_specs=[
            # streamed hidden-state tiles (double-buffered by the pipeline)
            pl.BlockSpec((batch_tile, seq_tile, H), lambda b, s: (b, s, 0)),
            # small head parameters: same block every step -> fetched once
            pl.BlockSpec((H, H), lambda b, s: (0, 0)),
            pl.BlockSpec((1, H), lambda b, s: (0, 0)),
            pl.BlockSpec((H, L), lambda b, s: (0, 0)),
            pl.BlockSpec((1, L), lambda b, s: (0, 0)),
        ],
        out_specs=pl.BlockSpec((batch_tile, L), lambda b, s: (b, 0)),
        scratch_shapes=[pltpu.VMEM((batch_tile, H), jnp.float32)],
    )

    return pl.pallas_call(
        kernel,
        out_shape=jax.ShapeDtypeStruct((B, L), out_dtype),
        grid_spec=grid_spec,
        compiler_params=pltpu.CompilerParams(
            dimension_semantics=("parallel", "arbitrary"),
            vmem_limit_bytes=32 * 1024 * 1024,
        ),
        cost_estimate=cost,
    )(hidden_states, w_proj, b_proj, w_clf, b_clf)


def reference_head(hidden_states, w_proj, b_proj, w_clf, b_clf):
    x = jnp.mean(hidden_states.astype(jnp.float32), axis=1)
    x = jnp.tanh(x @ w_proj + b_proj)
    return x @ w_clf + b_clf


if __name__ == "__main__":
    # Small shapes consistent with the module's forward:
    #   batch B=2, sequence S=16, hidden_size H=32, num_labels L=4
    B, S, H, L = 2, 16, 32, 4

    key = jax.random.PRNGKey(0)
    k_h, k_wp, k_bp, k_wc, k_bc = jax.random.split(key, 5)

    # Stand-in for transformer_model(...).last_hidden_state (bf16 end-to-end).
    hidden_states = jax.random.normal(k_h, (B, S, H), dtype=jnp.float32).astype(jnp.bfloat16)

    # Deterministic parameters (Linear(H,H), Linear(H,L)), stored as (in, out).
    w_proj = jax.random.normal(k_wp, (H, H), dtype=jnp.float32) * 0.05
    b_proj = jax.random.normal(k_bp, (1, H), dtype=jnp.float32) * 0.01
    w_clf = jax.random.normal(k_wc, (H, L), dtype=jnp.float32) * 0.05
    b_clf = jax.random.normal(k_bc, (1, L), dtype=jnp.float32) * 0.01

    # Main test: streamed reduction over two sequence tiles (S=16, ts=8).
    logits = speech_clf_head(hidden_states, w_proj, b_proj, w_clf, b_clf, seq_tile=8)
    logits = jax.block_until_ready(logits)

    ref = reference_head(hidden_states, w_proj, b_proj[0], w_clf, b_clf[0])
    assert logits.shape == (B, L)
    assert jnp.allclose(logits, ref, atol=2e-3, rtol=2e-3), "mismatch vs reference"

    # Tail-masking test: S not a multiple of the sequence tile.
    S2 = 20
    hidden2 = jax.random.normal(jax.random.PRNGKey(1), (B, S2, H),
                                dtype=jnp.float32).astype(jnp.bfloat16)
    logits2 = speech_clf_head(hidden2, w_proj, b_proj, w_clf, b_clf, seq_tile=8)
    logits2 = jax.block_until_ready(logits2)
    ref2 = reference_head(hidden2, w_proj, b_proj[0], w_clf, b_clf[0])
    assert jnp.allclose(logits2, ref2, atol=2e-3, rtol=2e-3), "mismatch vs reference (masked tail)"

    print("KERNEL_OK")
</pallas_src>

<mosaic_0001>
module attributes {stable_mosaic.version = 11 : i64} {
  func.func @_speech_clf_head_kernel(%arg0: i32, %arg1: i32, %arg2: memref<2x8x32xbf16, #tpu.memory_space<vmem>>, %arg3: memref<32x32xf32, #tpu.memory_space<vmem>>, %arg4: memref<1x32xf32, #tpu.memory_space<vmem>>, %arg5: memref<32x4xf32, #tpu.memory_space<vmem>>, %arg6: memref<1x4xf32, #tpu.memory_space<vmem>>, %arg7: memref<2x4xf32, #tpu.memory_space<vmem>>, %arg8: memref<2x32xf32, #tpu.memory_space<vmem>>) attributes {dimension_semantics = [#tpu.dimension_semantics<parallel>, #tpu.dimension_semantics<arbitrary>], iteration_bounds = array<i64: 1, 2>, scalar_prefetch = 0 : i64, scratch_operands = 1 : i64, tpu.core_type = #tpu.core_type<tc>, window_params = [{transform_indices = @transform_0, window_bounds = array<i64: 2, 8, 32>}, {pipeline_mode = #tpu.pipeline_mode<synchronous>, transform_indices = @transform_1, window_bounds = array<i64: 32, 32>}, {pipeline_mode = #tpu.pipeline_mode<synchronous>, transform_indices = @transform_2, window_bounds = array<i64: 1, 32>}, {pipeline_mode = #tpu.pipeline_mode<synchronous>, transform_indices = @transform_3, window_bounds = array<i64: 32, 4>}, {pipeline_mode = #tpu.pipeline_mode<synchronous>, transform_indices = @transform_4, window_bounds = array<i64: 1, 4>}, {transform_indices = @transform_5, window_bounds = array<i64: 2, 4>}]} {
    %c0_i32 = arith.constant 0 : i32
    %0 = arith.cmpi eq, %arg1, %c0_i32 : i32
    %1 = arith.extui %0 : i1 to i32
    %c0_i32_0 = arith.constant 0 : i32
    %2 = arith.cmpi ne, %1, %c0_i32_0 : i32
    scf.if %2 {
      %cst_8 = arith.constant 0.000000e+00 : f32
      %12 = vector.broadcast %cst_8 : f32 to vector<2x32xf32>
      %c0_9 = arith.constant 0 : index
      %c0_10 = arith.constant 0 : index
      %13 = vector.load %arg8[%c0_9, %c0_10] : memref<2x32xf32, #tpu.memory_space<vmem>>, vector<2x32xf32>
      tpu.vector_store %arg8[%c0_9, %c0_10], %12 {strides = array<i32>} : memref<2x32xf32, #tpu.memory_space<vmem>>, vector<2x32xf32>,
    } else {
    }
    %c0 = arith.constant 0 : index
    %c0_1 = arith.constant 0 : index
    %c0_2 = arith.constant 0 : index
    %3 = vector.load %arg2[%c0, %c0_1, %c0_2] : memref<2x8x32xbf16, #tpu.memory_space<vmem>>, vector<2x8x32xbf16>
    %c0_3 = arith.constant 0 : index
    %c0_4 = arith.constant 0 : index
    %4 = vector.load %arg8[%c0_3, %c0_4] : memref<2x32xf32, #tpu.memory_space<vmem>>, vector<2x32xf32>
    %5 = arith.extf %3 : vector<2x8x32xbf16> to vector<2x8x32xf32>
    %cst = arith.constant dense<0.000000e+00> : vector<2x32xf32>
    %6 = vector.multi_reduction <add>, %5, %cst [1] : vector<2x8x32xf32> to vector<2x32xf32>
    %7 = arith.addf %4, %6 : vector<2x32xf32>
    %c0_5 = arith.constant 0 : index
    %c0_6 = arith.constant 0 : index
    %8 = vector.load %arg8[%c0_5, %c0_6] : memref<2x32xf32, #tpu.memory_space<vmem>>, vector<2x32xf32>
    tpu.vector_store %arg8[%c0_5, %c0_6], %7 {strides = array<i32>} : memref<2x32xf32, #tpu.memory_space<vmem>>, vector<2x32xf32>,
    %c1_i32 = arith.constant 1 : i32
    %9 = arith.cmpi eq, %arg1, %c1_i32 : i32
    %10 = arith.extui %9 : i1 to i32
    %c0_i32_7 = arith.constant 0 : i32
    %11 = arith.cmpi ne, %10, %c0_i32_7 : i32
    scf.if %11 {
      %c0_8 = arith.constant 0 : index
      %c0_9 = arith.constant 0 : index
      %12 = vector.load %arg8[%c0_8, %c0_9] : memref<2x32xf32, #tpu.memory_space<vmem>>, vector<2x32xf32>
      %cst_10 = arith.constant 6.250000e-02 : f32
      %13 = vector.broadcast %cst_10 : f32 to vector<2x32xf32>
      %14 = arith.mulf %12, %13 : vector<2x32xf32>
      %c0_11 = arith.constant 0 : index
      %c0_12 = arith.constant 0 : index
      %15 = vector.load %arg3[%c0_11, %c0_12] : memref<32x32xf32, #tpu.memory_space<vmem>>, vector<32x32xf32>
      %cst_13 = arith.constant dense<0.000000e+00> : vector<2x32xf32>
      %16 = tpu.matmul %14, %15, %cst_13 {dimension_numbers = #tpu.dot_dimension_numbers<[1], [0], [0], [1], [0, 0, 1, 1], [], []>} : vector<2x32xf32>, vector<32x32xf32>, vector<2x32xf32> -> vector<2x32xf32>
      %c0_14 = arith.constant 0 : index
      %c0_15 = arith.constant 0 : index
      %17 = vector.load %arg4[%c0_14, %c0_15] : memref<1x32xf32, #tpu.memory_space<vmem>>, vector<1x32xf32>
      %18 = vector.broadcast %17 : vector<1x32xf32> to vector<2x32xf32>
      %19 = arith.addf %16, %18 : vector<2x32xf32>
      %20 = math.tanh %19 : vector<2x32xf32>
      %c0_16 = arith.constant 0 : index
      %c0_17 = arith.constant 0 : index
      %21 = vector.load %arg5[%c0_16, %c0_17] : memref<32x4xf32, #tpu.memory_space<vmem>>, vector<32x4xf32>
      %cst_18 = arith.constant dense<0.000000e+00> : vector<2x4xf32>
      %22 = tpu.matmul %20, %21, %cst_18 {dimension_numbers = #tpu.dot_dimension_numbers<[1], [0], [0], [1], [0, 0, 1, 1], [], []>} : vector<2x32xf32>, vector<32x4xf32>, vector<2x4xf32> -> vector<2x4xf32>
      %c0_19 = arith.constant 0 : index
      %c0_20 = arith.constant 0 : index
      %23 = vector.load %arg6[%c0_19, %c0_20] : memref<1x4xf32, #tpu.memory_space<vmem>>, vector<1x4xf32>
      %24 = vector.broadcast %23 : vector<1x4xf32> to vector<2x4xf32>
      %25 = arith.addf %22, %24 : vector<2x4xf32>
      %c0_21 = arith.constant 0 : index
      %c0_22 = arith.constant 0 : index
      %26 = vector.load %arg7[%c0_21, %c0_22] : memref<2x4xf32, #tpu.memory_space<vmem>>, vector<2x4xf32>
      tpu.vector_store %arg7[%c0_21, %c0_22], %25 {strides = array<i32>} : memref<2x4xf32, #tpu.memory_space<vmem>>, vector<2x4xf32>,
    } else {
    }
    return
  }
  func.func @transform_0(%arg0: i32, %arg1: i32) -> (i32, i32, i32) {
    %c0_i32 = arith.constant 0 : i32
    %c0_i32_0 = arith.constant 0 : i32
    return %arg0, %arg1, %c0_i32 : i32, i32, i32
  }
  func.func @transform_1(%arg0: i32, %arg1: i32) -> (i32, i32) {
    %c0_i32 = arith.constant 0 : i32
    %c0_i32_0 = arith.constant 0 : i32
    %c0_i32_1 = arith.constant 0 : i32
    return %c0_i32, %c0_i32_0 : i32, i32
  }
  func.func @transform_2(%arg0: i32, %arg1: i32) -> (i32, i32) {
    %c0_i32 = arith.constant 0 : i32
    %c0_i32_0 = arith.constant 0 : i32
    %c0_i32_1 = arith.constant 0 : i32
    return %c0_i32, %c0_i32_0 : i32, i32
  }
  func.func @transform_3(%arg0: i32, %arg1: i32) -> (i32, i32) {
    %c0_i32 = arith.constant 0 : i32
    %c0_i32_0 = arith.constant 0 : i32
    %c0_i32_1 = arith.constant 0 : i32
    return %c0_i32, %c0_i32_0 : i32, i32
  }
  func.func @transform_4(%arg0: i32, %arg1: i32) -> (i32, i32) {
    %c0_i32 = arith.constant 0 : i32
    %c0_i32_0 = arith.constant 0 : i32
    %c0_i32_1 = arith.constant 0 : i32
    return %c0_i32, %c0_i32_0 : i32, i32
  }
  func.func @transform_5(%arg0: i32, %arg1: i32) -> (i32, i32) {
    %c0_i32 = arith.constant 0 : i32
    %c0_i32_0 = arith.constant 0 : i32
    return %arg0, %c0_i32 : i32, i32
  }
}

</mosaic_0001>

<llo_original>
// kernel: tpu_custom_call.1
$region0: #{tpu_custom_call.1}
  #allocation0 [shape = 'u32[]', space=smem, size = 0x4, offset = 0x4, fixed_abs, tag = 'smem constant byte address 0x4 - core index']
  #allocation1 [shape = 'u32[144,128]{1,0:T(1,128)}', space=vmem, size = 0x12000, scoped, tag = 'internal scratch']
  #allocation2 [shape = 'f32[2,32]{1,0:T(2,128)}', space=vmem, size = 0x400, scoped, tag = 'scratch operand']
  %s0 = inlined_call_operand.hbm [shape: bf16[2,16,32], index: 0, kind: input, shape index: {}]
  %s1 = inlined_call_operand.vmem [shape: f32[32,32], index: 1, kind: input, shape index: {}]
  %s2 = inlined_call_operand.vmem [shape: f32[1,32], index: 2, kind: input, shape index: {}]
  %s3 = inlined_call_operand.vmem [shape: f32[32,4], index: 3, kind: input, shape index: {}]
  %s4 = inlined_call_operand.vmem [shape: f32[1,4], index: 4, kind: input, shape index: {}]
  %s5 = inlined_call_operand.hbm [shape: f32[2,4], index: 5, kind: output, shape index: {}]
  %s6 = sld [smem:[#allocation0]]
  $region65: #{tpu_custom_call.1} parent=0
    _
  %s8 = ssub.s32 1, %s6
  %s9 = scalar_select 0, %s8, %s6
  $region1: #{tpu_custom_call.1} parent=0
    #allocation3 [shape = 'u8[8192]{0}', space=vmem, size = 0x2000, scoped, tag = 'input window, operand 0']
    #allocation4 [shape = 's32[2]{0}', space=sflag, size = 0x8, scoped, tag = 'scoped memory for tpu_custom_call.1']
    #allocation5 [shape = 's32[2]{0}', space=sflag, size = 0x8, scoped, tag = 'scoped memory for tpu_custom_call.1']
    #allocation6 [shape = 'u8[1024]{0}', space=vmem, size = 0x400, scoped, tag = 'output window, operand 0, single buffered']
    %10 = vsyncpa [#allocation4], 0
    %s11 = scalar_lea.sflag [#allocation4], 1
    %12 = vsyncpa %s11, 0
    %13 = vsyncpa [#allocation5], 0
    loop: start=0, step=1, limit=4
    $region2: #{tpu_custom_call.1} parent=1 // loop_pre_header
      _
    $region3: #{tpu_custom_call.1} parent=1 // loop_header
      %s15 = sphi 0, %s19
      %p16 = scmp.ge.s32.totalorder %s15, 4
      %s22 = sphi 0, %s34
      %s23 = sphi 0, %s30
      %s24 = sphi 0, %s22
      %s25 = sphi 0, %s23
      %s26 = sphi 0, %s24
      %s27 = sphi 0, %s25
      %s39 = sphi 0, %s41
      %s42 = sphi 0, %s39
      %s43 = sphi 0, %s42
      %s59 = sphi 0, %s43
      %s63 = sphi 0, %s63
      %s65 = sphi 0, %s63
      %s66 = sphi 0, %s65
      %s80 = sphi 0, %s66
      %s84 = sphi 0, %s84
      %s86 = sphi 0, %s84
      %s87 = sphi 0, %s86
      %s101 = sphi 0, %s87
      %s105 = sphi 0, %s105
      %s107 = sphi 0, %s105
      %s108 = sphi 0, %s107
      %s122 = sphi 0, %s108
      %s126 = sphi 0, %s126
      %s128 = sphi 0, %s126
      %s129 = sphi 0, %s128
      %s143 = sphi 0, %s129
      %s149 = sphi 0, %s151
      %s152 = sphi 0, %s149
      %s153 = sphi 0, %s152
      %s169 = sphi 0, %s153
    $region4: #{tpu_custom_call.1} parent=1 // loop_header_branch
      %18 = sbr.rel (%p16) target = $region8
    $region5: #{tpu_custom_call.1} parent=1 // loop_body
      %s20 = ssub.s32 %s15, 1
      %s21 = ssub.s32 %s15, 2
      %s28 = sadd.s32 1, %s23
      %p29 = scmp.ge.s32.totalorder %s28, 2
      %s30 = scalar_select %p29, 0, %s28
      %s31 = sadd.s32 1, %s22
      %s32 = scalar_select %p29, %s31, %s22
      %p33 = scmp.ge.s32.totalorder %s32, 1
      %s34 = scalar_select %p33, 0, %s32
      %s35 = ssub.s32 %s22, %s34
      %s36 = ssub.s32 %s23, %s30
      %s37 = sor.u32 %s35, %s36
      %p38 = scmp.eq.s32.totalorder %s37, 0
      %s40 = sadd.s32 %s39, 1
      %s41 = scalar_select %p38, %s39, %s40
      %p44 = pneg %p38
      %p45 = scmp.eq.s32.totalorder %s15, 1
      %p46 = por %p44, %p45
      %p47 = scmp.ne.s32.totalorder %s39, %s42
      %p48 = scmp.eq.s32.totalorder %s15, 0
      %p49 = por %p47, %p48
      %p50 = scmp.ne.s32.totalorder %s39, %s42
      %p51 = scmp.eq.s32.totalorder %s20, 1
      %p52 = por %p50, %p51
      %p53 = scmp.ne.s32.totalorder %s42, %s43
      %p54 = scmp.eq.s32.totalorder %s20, 0
      %p55 = por %p53, %p54
      %p56 = scmp.ne.s32.totalorder %s42, %s43
      %p57 = scmp.eq.s32.totalorder %s21, 1
      %p58 = por %p56, %p57
      %p60 = scmp.ne.s32.totalorder %s43, %s59
      %p61 = scmp.eq.s32.totalorder %s21, 0
      %p62 = por %p60, %p61
      %s64 = sadd.s32 %s63, 1
      %p67 = scmp.eq.s32.totalorder %s15, 1
      %p68 = scmp.ne.s32.totalorder %s63, %s65
      %p69 = scmp.eq.s32.totalorder %s15, 0
      %p70 = por %p68, %p69
      %p71 = scmp.ne.s32.totalorder %s63, %s65
      %p72 = scmp.eq.s32.totalorder %s20, 1
      %p73 = por %p71, %p72
      %p74 = scmp.ne.s32.totalorder %s65, %s66
      %p75 = scmp.eq.s32.totalorder %s20, 0
      %p76 = por %p74, %p75
      %p77 = scmp.ne.s32.totalorder %s65, %s66
      %p78 = scmp.eq.s32.totalorder %s21, 1
      %p79 = por %p77, %p78
      %p81 = scmp.ne.s32.totalorder %s66, %s80
      %p82 = scmp.eq.s32.totalorder %s21, 0
      %p83 = por %p81, %p82
      %s85 = sadd.s32 %s84, 1
      %p88 = scmp.eq.s32.totalorder %s15, 1
      %p89 = scmp.ne.s32.totalorder %s84, %s86
      %p90 = scmp.eq.s32.totalorder %s15, 0
      %p91 = por %p89, %p90
      %p92 = scmp.ne.s32.totalorder %s84, %s86
      %p93 = scmp.eq.s32.totalorder %s20, 1
      %p94 = por %p92, %p93
      %p95 = scmp.ne.s32.totalorder %s86, %s87
      %p96 = scmp.eq.s32.totalorder %s20, 0
      %p97 = por %p95, %p96
      %p98 = scmp.ne.s32.totalorder %s86, %s87
      %p99 = scmp.eq.s32.totalorder %s21, 1
      %p100 = por %p98, %p99
      %p102 = scmp.ne.s32.totalorder %s87, %s101
      %p103 = scmp.eq.s32.totalorder %s21, 0
      %p104 = por %p102, %p103
      %s106 = sadd.s32 %s105, 1
      %p109 = scmp.eq.s32.totalorder %s15, 1
      %p110 = scmp.ne.s32.totalorder %s105, %s107
      %p111 = scmp.eq.s32.totalorder %s15, 0
      %p112 = por %p110, %p111
      %p113 = scmp.ne.s32.totalorder %s105, %s107
      %p114 = scmp.eq.s32.totalorder %s20, 1
      %p115 = por %p113, %p114
      %p116 = scmp.ne.s32.totalorder %s107, %s108
      %p117 = scmp.eq.s32.totalorder %s20, 0
      %p118 = por %p116, %p117
      %p119 = scmp.ne.s32.totalorder %s107, %s108
      %p120 = scmp.eq.s32.totalorder %s21, 1
      %p121 = por %p119, %p120
      %p123 = scmp.ne.s32.totalorder %s108, %s122
      %p124 = scmp.eq.s32.totalorder %s21, 0
      %p125 = por %p123, %p124
      %s127 = sadd.s32 %s126, 1
      %p130 = scmp.eq.s32.totalorder %s15, 1
      %p131 = scmp.ne.s32.totalorder %s126, %s128
      %p132 = scmp.eq.s32.totalorder %s15, 0
      %p133 = por %p131, %p132
      %p134 = scmp.ne.s32.totalorder %s126, %s128
      %p135 = scmp.eq.s32.totalorder %s20, 1
      %p136 = por %p134, %p135
      %p137 = scmp.ne.s32.totalorder %s128, %s129
      %p138 = scmp.eq.s32.totalorder %s20, 0
      %p139 = por %p137, %p138
      %p140 = scmp.ne.s32.totalorder %s128, %s129
      %p141 = scmp.eq.s32.totalorder %s21, 1
      %p142 = por %p140, %p141
      %p144 = scmp.ne.s32.totalorder %s129, %s143
      %p145 = scmp.eq.s32.totalorder %s21, 0
      %p146 = por %p144, %p145
      %s147 = ssub.s32 %s22, %s34
      %p148 = scmp.eq.s32.totalorder %s147, 0
      %s150 = sadd.s32 %s149, 1
      %s151 = scalar_select %p148, %s149, %s150
      %p154 = pneg %p148
      %p155 = scmp.eq.s32.totalorder %s15, 1
      %p156 = por %p154, %p155
      %p157 = scmp.ne.s32.totalorder %s149, %s152
      %p158 = scmp.eq.s32.totalorder %s15, 0
      %p159 = por %p157, %p158
      %p160 = scmp.ne.s32.totalorder %s149, %s152
      %p161 = scmp.eq.s32.totalorder %s20, 1
      %p162 = por %p160, %p161
      %p163 = scmp.ne.s32.totalorder %s152, %s153
      %p164 = scmp.eq.s32.totalorder %s20, 0
      %p165 = por %p163, %p164
      %p166 = scmp.ne.s32.totalorder %s152, %s153
      %p167 = scmp.eq.s32.totalorder %s21, 1
      %p168 = por %p166, %p167
      %p170 = scmp.ne.s32.totalorder %s153, %s169
      %p171 = scmp.eq.s32.totalorder %s21, 0
      %p172 = por %p170, %p171
      %p173 = scmp.le.s32.totalorder 1, %s15
      %p174 = scmp.lt.s32.totalorder %s15, 3
      %p175 = pnand %p173, %p174
      %p176 = pneg %p175
      // Predicated region
      $region9: #{tpu_custom_call.1} parent=5 // pred_check
        _
      $region10: #{tpu_custom_call.1} parent=5 // pred_check_branch
        %178 = sbr.rel (%p175) target = $region12
      $region11: #{tpu_custom_call.1} parent=5 // pred_region
        %s179 = ssub.s32 %s15, 1
        // Predicated region
        $region13: #{tpu_custom_call.1} parent=11 // pred_check
          %p180 = pneg %p76
        $region14: #{tpu_custom_call.1} parent=11 // pred_check_branch
          %182 = sbr.rel (%p180) target = $region16
        $region15: #{tpu_custom_call.1} parent=11 // pred_region
          _
        $region16: #{tpu_custom_call.1} parent=11 // pred_fallthru
          _
        // Predicated region
        $region17: #{tpu_custom_call.1} parent=11 // pred_check
          %p183 = pneg %p97
        $region18: #{tpu_custom_call.1} parent=11 // pred_check_branch
          %185 = sbr.rel (%p183) target = $region20
        $region19: #{tpu_custom_call.1} parent=11 // pred_region
          _
        $region20: #{tpu_custom_call.1} parent=11 // pred_fallthru
          _
        // Predicated region
        $region21: #{tpu_custom_call.1} parent=11 // pred_check
          %p186 = pneg %p118
        $region22: #{tpu_custom_call.1} parent=11 // pred_check_branch
          %188 = sbr.rel (%p186) target = $region24
        $region23: #{tpu_custom_call.1} parent=11 // pred_region
          _
        $region24: #{tpu_custom_call.1} parent=11 // pred_fallthru
          _
        // Predicated region
        $region25: #{tpu_custom_call.1} parent=11 // pred_check
          %p189 = pneg %p139
        $region26: #{tpu_custom_call.1} parent=11 // pred_check_branch
          %191 = sbr.rel (%p189) target = $region28
        $region27: #{tpu_custom_call.1} parent=11 // pred_region
          _
        $region28: #{tpu_custom_call.1} parent=11 // pred_fallthru
          _
      $region12: #{tpu_custom_call.1} parent=5 // pred_fallthru
        _
      %p192 = scmp.lt.s32.totalorder %s15, 2
      // Predicated region
      $region29: #{tpu_custom_call.1} parent=5 // pred_check
        %p193 = pneg %p192
      $region30: #{tpu_custom_call.1} parent=5 // pred_check_branch
        %195 = sbr.rel (%p193) target = $region32
      $region31: #{tpu_custom_call.1} parent=5 // pred_region
        // Predicated region
        $region33: #{tpu_custom_call.1} parent=31 // pred_check
          %p196 = pneg %p49
        $region34: #{tpu_custom_call.1} parent=31 // pred_check_branch
          %198 = sbr.rel (%p196) target = $region36
        $region35: #{tpu_custom_call.1} parent=31 // pred_region
          %s199 = sand.u32 %s39, 1
          %s200 = scalar_lea.sflag [#allocation4], %s199
          %s201 = sand.u32 %s39, 1
          %s202 = smul.addr %s201, 8
          %s203 = scalar_lea.vmem [#allocation3], %s202
          %s204 = smul.u32 2, %s22
          %s206 = ssub.s32 128, 128
          %207 = vsyncadd %s200, %s206
          %s208 = smul.addr %s204, 2
          %s209 = sadd.s32 %s23, %s208
          %s210 = smul.addr %s209, 64
          %s211 = scalar_lea.hbm %s0, %s210
          %s212 = sshll.u32 %s203, 4
          %s213 = int_to_ptr.vmem [resolvable:$true] %s212
          %218 = dma.hbm_to_vmem [thread:$0]  %s211, 128, %s213, %s200, 128, 64, 4
        $region36: #{tpu_custom_call.1} parent=31 // pred_fallthru
          _
      $region32: #{tpu_custom_call.1} parent=5 // pred_fallthru
        _
      %p219 = scmp.le.s32.totalorder 1, %s15
      %p220 = scmp.lt.s32.totalorder %s15, 3
      %p221 = pnand %p219, %p220
      %p222 = pneg %p221
      // Predicated region
      $region37: #{tpu_custom_call.1} parent=5 // pred_check
        _
      $region38: #{tpu_custom_call.1} parent=5 // pred_check_branch
        %224 = sbr.rel (%p221) target = $region40
      $region39: #{tpu_custom_call.1} parent=5 // pred_region
        %s225 = ssub.s32 %s15, 1
        %s226 = sand.u32 %s42, 1
        %s227 = scalar_lea.sflag [#allocation4], %s226
        %s228 = sand.u32 %s42, 1
        %s229 = smul.addr %s228, 8
        %s230 = scalar_lea.vmem [#allocation3], %s229
        // Predicated region
        $region41: #{tpu_custom_call.1} parent=39 // pred_check
          %p231 = pneg %p55
        $region42: #{tpu_custom_call.1} parent=39 // pred_check_branch
          %233 = sbr.rel (%p231) target = $region44
        $region43: #{tpu_custom_call.1} parent=39 // pred_region
          %234 = dma.done %s227, 128
        $region44: #{tpu_custom_call.1} parent=39 // pred_fallthru
          _
        %s235 = sand.u32 %s42, 1
        %s236 = scalar_lea.sflag [#allocation4], %s235
        %s237 = sand.u32 %s42, 1
        %s238 = smul.addr %s237, 8
        %s239 = scalar_lea.vmem [#allocation3], %s238
        %p240 = pneg %p55
        %p241 = pneg %p52
        %p242 = pneg %p76
        %p243 = pneg %p73
        %p244 = pneg %p97
        %p245 = pneg %p94
        %p246 = pneg %p118
        %p247 = pneg %p115
        %p248 = pneg %p139
        %p249 = pneg %p136
        %p250 = pneg %p165
        %p251 = pneg %p162
        %s252 = smul.u32 2, %s24
        %p253 = scmp.eq.s32.totalorder %s25, 0
        // Predicated region
        $region45: #{tpu_custom_call.1} parent=39 // pred_check
          %p254 = pneg %p253
        $region46: #{tpu_custom_call.1} parent=39 // pred_check_branch
          %256 = sbr.rel (%p254) target = $region48
        $region47: #{tpu_custom_call.1} parent=39 // pred_region
          %vm257 = vcmask 254976
          %258 = vst.msk [vmem:[#allocation2] sm:$0x3] %vm257, 0.0
        $region48: #{tpu_custom_call.1} parent=39 // pred_fallthru
          _
        %v259 = vld [vmem:[%s230] sm:$0xf]
        %v260 = vld [vmem:[%s230 + $0x4] sm:$0xf]
        %v261 = vld [vmem:[#allocation2] sm:$0x3]
        %v262 = vunpack.c.l.bf16 %v259
        %v263 = vunpack.c.l.bf16 %v260
        %vm264 = vcmask 261120
        %v265 = vsel %vm264, %v262, 0.0
        %v266 = vrot.slane %v265, 4
        %v267 = vadd.f32 %v265, %v266
        %v268 = vrot.slane %v267, 2
        %v269 = vadd.f32 %v267, %v268
        %v270 = vrot.slane %v269, 1
        %v271 = vadd.f32 %v269, %v270
        %v272 = vsel %vm264, %v263, 0.0
        %v273 = vrot.slane %v272, 4
        %v274 = vadd.f32 %v272, %v273
        %v275 = vrot.slane %v274, 2
        %v276 = vadd.f32 %v274, %v275
        %v277 = vrot.slane %v276, 1
        %v278 = vadd.f32 %v276, %v277
        %vm281 = vcmask 1041409
        %v282 = vsel %vm281, %v278, %v271
        %v284 = vadd.f32 %v261, %v282
        %vm285 = vcmask 254976
        %286 = vst.msk [vmem:[#allocation2] sm:$0x3] %vm285, %v284
        %p287 = scmp.eq.s32.totalorder %s25, 1
        // Predicated region
        $region49: #{tpu_custom_call.1} parent=39 // pred_check
          %p288 = pneg %p287
        $region50: #{tpu_custom_call.1} parent=39 // pred_check_branch
          %290 = sbr.rel (%p288) target = $region52
        $region51: #{tpu_custom_call.1} parent=39 // pred_region
          %v291 = vld [vmem:[#allocation2] sm:$0x3]
          %v292 = vmul.f32 %v291, 0.0625
          %v293 = vld [vmem:[%s1] sm:$0xff]
          %v294 = vld [vmem:[%s1 + $0x8] sm:$0xff]
          %v295 = vld [vmem:[%s1 + $0x10] sm:$0xff]
          %v296 = vld [vmem:[%s1 + $0x18] sm:$0xff]
          %v297 = vld [vmem:[%s2] sm:$0x1]
          %v299 = vlaneseq
          %v300 = vshrl.u32 %v299, 7
          %v301 = vsub.s32 0, %v300
          %v302 = vrot.slane %v297, %v301
          %v305 = vsel %vm264, %v292, 0
          %307 = vmatprep.subr.mxu0 0.0
          %308 = vmatpush1.msra.mxu0 %v293
          %309 = vmatprep.subr.mxu0 0.0
          %310 = vmatpush1.msra.mxu0 %v294
          %311 = vmatprep.subr.mxu0 0.0
          %312 = vmatpush1.msra.mxu0 %v295
          %313 = vmatprep.subr.mxu0 0.0
          %314 = vmatpush1.msra.mxu0 %v296
          %315 = vmatprep.subr.mxu0 0.0
          %316 = vmatpush1.msra.mxu0 0.0
          %317 = vmatprep.subr.mxu0 0.0
          %318 = vmatpush1.msra.mxu0 0.0
          %319 = vmatprep.subr.mxu0 0.0
          %320 = vmatpush1.msra.mxu0 0.0
          %321 = vmatprep.subr.mxu0 0.0
          %322 = vmatpush1.msra.mxu0 0.0
          %323 = vmatprep.subr.mxu0 0.0
          %324 = vmatpush1.msra.mxu0 0.0
          %325 = vmatprep.subr.mxu0 0.0
          %326 = vmatpush1.msra.mxu0 0.0
          %327 = vmatprep.subr.mxu0 0.0
          %328 = vmatpush1.msra.mxu0 0.0
          %329 = vmatprep.subr.mxu0 0.0
          %330 = vmatpush1.msra.mxu0 0.0
          %331 = vmatprep.subr.mxu0 0.0
          %332 = vmatpush1.msra.mxu0 0.0
          %333 = vmatprep.subr.mxu0 0.0
          %334 = vmatpush1.msra.mxu0 0.0
          %335 = vmatprep.subr.mxu0 0.0
          %336 = vmatpush1.msra.mxu0 0.0
          %337 = vmatprep.subr.mxu0 0.0
          %338 = vmatpush1.msra.mxu0 0.0
          %339 = vmatprep.subr.mxu0 0.0
          %340 = vmatpush1.msra.mxu0 0.0
          %341 = vmatprep.subr.mxu0 0.0
          %342 = vmatpush1.msra.mxu0 0.0
          %343 = vmatprep.subr.mxu0 0.0
          %344 = vmatpush1.msra.mxu0 0.0
          %345 = vmatprep.subr.mxu0 0.0
          %346 = vmatpush1.msra.mxu0 0.0
          %347 = vmatprep.subr.mxu0 0.0
          %348 = vmatpush1.msra.mxu0 0.0
          %349 = vmatprep.subr.mxu0 0.0
          %350 = vmatpush1.msra.mxu0 0.0
          %351 = vmatprep.subr.mxu0 0.0
          %352 = vmatpush1.msra.mxu0 0.0
          %353 = vmatprep.subr.mxu0 0.0
          %354 = vmatpush1.msra.mxu0 0.0
          %355 = vmatprep.subr.mxu0 0.0
          %356 = vmatpush1.msra.mxu0 0.0
          %357 = vmatprep.subr.mxu0 0.0
          %358 = vmatpush1.msra.mxu0 0.0
          %359 = vmatprep.subr.mxu0 0.0
          %360 = vmatpush1.msra.mxu0 0.0
          %361 = vmatprep.subr.mxu0 0.0
          %362 = vmatpush1.msra.mxu0 0.0
          %363 = vmatprep.subr.mxu0 0.0
          %364 = vmatpush1.msra.mxu0 0.0
          %365 = vmatprep.subr.mxu0 0.0
          %366 = vmatpush1.msra.mxu0 0.0
          %367 = vmatprep.subr.mxu0 0.0
          %368 = vmatpush1.msra.mxu0 0.0
          %369 = vmatprep.subr.mxu0 0.0
          %370 = vmatpush1.msra.mxu0 0.0
          %371 = vmatprep.mubr.f32.mxu0 0.0
          %372 = vmatmul.mubr.f32.gmra.mrb[0].mxu0 %v305
          %v373 = vpop.f32.mrb[0].mxu0
          %v374 = vadd.f32 %v302, %v373
          %v375 = vpop.f32.mrb[0].mxu0
          %376 = vdwg.mxu0
          %v377 = vtanh.pop %v374
          %v378 = vld [vmem:[%s3] sm:$0xff]
          %v379 = vld [vmem:[%s3 + $0x8] sm:$0xff]
          %v380 = vld [vmem:[%s3 + $0x10] sm:$0xff]
          %v381 = vld [vmem:[%s3 + $0x18] sm:$0xff]
          %v382 = vld [vmem:[%s4] sm:$0x1]
          %v384 = vlaneseq
          %v385 = vshrl.u32 %v384, 7
          %v386 = vsub.s32 0, %v385
          %v387 = vrot.slane %v382, %v386
          %v390 = vsel %vm264, %v377, 0
          %392 = vmatprep.subr.mxu0 0.0
          %393 = vmatpush1.msra.mxu0 %v378
          %394 = vmatprep.subr.mxu0 0.0
          %395 = vmatpush1.msra.mxu0 %v379
          %396 = vmatprep.subr.mxu0 0.0
          %397 = vmatpush1.msra.mxu0 %v380
          %398 = vmatprep.subr.mxu0 0.0
          %399 = vmatpush1.msra.mxu0 %v381
          %400 = vmatprep.subr.mxu0 0.0
          %401 = vmatpush1.msra.mxu0 0.0
          %402 = vmatprep.subr.mxu0 0.0
          %403 = vmatpush1.msra.mxu0 0.0
          %404 = vmatprep.subr.mxu0 0.0
          %405 = vmatpush1.msra.mxu0 0.0
          %406 = vmatprep.subr.mxu0 0.0
          %407 = vmatpush1.msra.mxu0 0.0
          %408 = vmatprep.subr.mxu0 0.0
          %409 = vmatpush1.msra.mxu0 0.0
          %410 = vmatprep.subr.mxu0 0.0
          %411 = vmatpush1.msra.mxu0 0.0
          %412 = vmatprep.subr.mxu0 0.0
          %413 = vmatpush1.msra.mxu0 0.0
          %414 = vmatprep.subr.mxu0 0.0
          %415 = vmatpush1.msra.mxu0 0.0
          %416 = vmatprep.subr.mxu0 0.0
          %417 = vmatpush1.msra.mxu0 0.0
          %418 = vmatprep.subr.mxu0 0.0
          %419 = vmatpush1.msra.mxu0 0.0
          %420 = vmatprep.subr.mxu0 0.0
          %421 = vmatpush1.msra.mxu0 0.0
          %422 = vmatprep.subr.mxu0 0.0
          %423 = vmatpush1.msra.mxu0 0.0
          %424 = vmatprep.subr.mxu0 0.0
          %425 = vmatpush1.msra.mxu0 0.0
          %426 = vmatprep.subr.mxu0 0.0
          %427 = vmatpush1.msra.mxu0 0.0
          %428 = vmatprep.subr.mxu0 0.0
          %429 = vmatpush1.msra.mxu0 0.0
          %430 = vmatprep.subr.mxu0 0.0
          %431 = vmatpush1.msra.mxu0 0.0
          %432 = vmatprep.subr.mxu0 0.0
          %433 = vmatpush1.msra.mxu0 0.0
          %434 = vmatprep.subr.mxu0 0.0
          %435 = vmatpush1.msra.mxu0 0.0
          %436 = vmatprep.subr.mxu0 0.0
          %437 = vmatpush1.msra.mxu0 0.0
          %438 = vmatprep.subr.mxu0 0.0
          %439 = vmatpush1.msra.mxu0 0.0
          %440 = vmatprep.subr.mxu0 0.0
          %441 = vmatpush1.msra.mxu0 0.0
          %442 = vmatprep.subr.mxu0 0.0
          %443 = vmatpush1.msra.mxu0 0.0
          %444 = vmatprep.subr.mxu0 0.0
          %445 = vmatpush1.msra.mxu0 0.0
          %446 = vmatprep.subr.mxu0 0.0
          %447 = vmatpush1.msra.mxu0 0.0
          %448 = vmatprep.subr.mxu0 0.0
          %449 = vmatpush1.msra.mxu0 0.0
          %450 = vmatprep.subr.mxu0 0.0
          %451 = vmatpush1.msra.mxu0 0.0
          %452 = vmatprep.subr.mxu0 0.0
          %453 = vmatpush1.msra.mxu0 0.0
          %454 = vmatprep.subr.mxu0 0.0
          %455 = vmatpush1.msra.mxu0 0.0
          %456 = vmatprep.mubr.f32.mxu0 0.0
          %457 = vmatmul.mubr.f32.gmra.mrb[0].mxu0 %v390
          %v458 = vpop.f32.mrb[0].mxu0
          %v459 = vadd.f32 %v387, %v458
          %v460 = vpop.f32.mrb[0].mxu0
          %461 = vdwg.mxu0
          %vm462 = vcmask 25600
          %463 = vst.msk [vmem:[#allocation6] sm:$0x3] %vm462, %v459
        $region52: #{tpu_custom_call.1} parent=39 // pred_fallthru
          _
        // Predicated region
        $region53: #{tpu_custom_call.1} parent=39 // pred_check
          %p464 = pneg %p162
        $region54: #{tpu_custom_call.1} parent=39 // pred_check_branch
          %466 = sbr.rel (%p464) target = $region56
        $region55: #{tpu_custom_call.1} parent=39 // pred_region
          %s468 = ssub.s32 32, 32
          %469 = vsyncadd [#allocation5], %s468
          %s470 = smul.addr %s24, 32
          %s471 = scalar_lea.hbm %s5, %s470
          %s473 = sshll.u32 [#allocation6], 4
          %s474 = int_to_ptr.vmem [resolvable:$true] %s473
          %476 = dma.vmem_to_hbm [thread:$0]  %s474, 32, %s471, [#allocation5]
        $region56: #{tpu_custom_call.1} parent=39 // pred_fallthru
          _
        // Predicated region
        $region57: #{tpu_custom_call.1} parent=39 // pred_check
          %p477 = pneg %p162
        $region58: #{tpu_custom_call.1} parent=39 // pred_check_branch
          %479 = sbr.rel (%p477) target = $region60
        $region59: #{tpu_custom_call.1} parent=39 // pred_region
          %480 = dma.done [#allocation5], 32
        $region60: #{tpu_custom_call.1} parent=39 // pred_fallthru
          _
      $region40: #{tpu_custom_call.1} parent=5 // pred_fallthru
        _
      %p481 = scmp.le.s32.totalorder 2, %s15
      // Predicated region
      $region61: #{tpu_custom_call.1} parent=5 // pred_check
        %p482 = pneg %p481
      $region62: #{tpu_custom_call.1} parent=5 // pred_check_branch
        %484 = sbr.rel (%p482) target = $region64
      $region63: #{tpu_custom_call.1} parent=5 // pred_region
        %s485 = ssub.s32 %s15, 2
      $region64: #{tpu_custom_call.1} parent=5 // pred_fallthru
        _
    $region6: #{tpu_custom_call.1} parent=1 // loop_footer
      %s19 = sadd.s32 1, %s15
    $region7: #{tpu_custom_call.1} parent=1 // loop_footer_branch
      %14 = sbr.rel target = $region3
    $region8: #{tpu_custom_call.1} parent=1 // loop_exit
      _
    %486 = vsyncpa [#allocation4], 1
    %s487 = scalar_lea.sflag [#allocation4], 1
    %488 = vsyncpa %s487, 1
    %489 = vsyncpa [#allocation5], 1
    %s490 = scalar_lea.sflag [#allocation5], 1
    %491 = vsyncpa %s490, 1

</llo_original>
